<compile_context>
chip_gen: v6e
topology: v6e:2x2x1
jax: 0.10.0
libtpu: 0.0.40
codegen_flags: <defaults>
</compile_context>

<pallas_src>
import jax
import jax.numpy as jnp
from jax.experimental import pallas as pl
from jax.experimental.pallas import tpu as pltpu


# --------------------------------------------------------------------------
# Fused single-pass kernel: whole (C, HW) image slab resident, GAP in-kernel.
# --------------------------------------------------------------------------
def mscam_fused_kernel(x_ref, w1_ref, b1_ref, w2_ref, b2_ref,
                       w1g_ref, b1g_ref, w2g_ref, b2g_ref, o_ref):
    x = x_ref[0]                                            # (C, HW) f32
    HW = x.shape[1]

    # ---- global branch: GAP -> conv/BN -> ReLU -> conv/BN ----------------
    # GAP commutes with the first (linear) 1x1 conv: w1g @ mean(x) == mean(w1g @ x).
    tg = jnp.dot(w1g_ref[...], x, preferred_element_type=jnp.float32)   # (inter, HW)
    hg = jnp.maximum(jnp.mean(tg, axis=1, keepdims=True) + b1g_ref[...], 0.0)  # (inter, 1)
    inter = hg.shape[0]
    # Second 1x1 conv on the lane-broadcast hidden vector: keeps the matmul at
    # a regular (C, inter) @ (inter, HW) shape (every column equals gl).
    gl = jnp.dot(w2g_ref[...], jnp.broadcast_to(hg, (inter, HW)),
                 preferred_element_type=jnp.float32) + b2g_ref[...]     # (C, HW)

    # ---- local branch: conv/BN -> ReLU -> conv/BN -------------------------
    h = jnp.maximum(
        jnp.dot(w1_ref[...], x, preferred_element_type=jnp.float32) + b1_ref[...], 0.0)
    xl = jnp.dot(w2_ref[...], h, preferred_element_type=jnp.float32) + b2_ref[...]

    # ---- fuse, sigmoid-gate, modulate -------------------------------------
    o_ref[0] = x * jax.nn.sigmoid(xl + gl)


# --------------------------------------------------------------------------
# Tiled streaming kernel: global branch precomputed and folded into a
# per-batch bias; kernel is two matmuls + ReLU + sigmoid gate per tile.
# --------------------------------------------------------------------------
def mscam_tiled_kernel(x_ref, w1_ref, b1_ref, w2_ref, b2n_ref, o_ref):
    x = x_ref[0]                                            # (C, T) f32
    h = jnp.maximum(
        jnp.dot(w1_ref[...], x, preferred_element_type=jnp.float32) + b1_ref[...], 0.0)
    xl = jnp.dot(w2_ref[...], h, preferred_element_type=jnp.float32) + b2n_ref[0]
    o_ref[0] = x * jax.nn.sigmoid(xl)


def _pick_tile_hw(HW, C, dtype_bytes=4, target_bytes=1 << 20):
    """Largest HW tile that (a) is a multiple of 128, (b) divides HW and
    (c) keeps one x block around ~target_bytes (small enough for v7x VMEM)."""
    if HW % 128 != 0:
        return HW                      # fall back to a full-row block
    max_tile = max(128, (target_bytes // (C * dtype_bytes)) // 128 * 128)
    tile = min(HW, max_tile)
    while HW % tile != 0:              # terminates at worst at tile == 128
        tile -= 128
    return tile


# Per-image slab size below which the fused single-pass kernel is used.
_FUSED_SLAB_BYTES = 1 << 20


def ms_cam_pallas(x_nchw, params, force_tiled=False):
    (w1l, b1l, w2l, b2l, w1g, b1g, w2g, b2g) = params
    N, C, H, W = x_nchw.shape
    HW = H * W
    inter = w1l.shape[1]

    # NCHW -> (N, C, HW): pure reshape, no data movement.
    x = x_nchw.reshape(N, C, HW)

    # Local-branch weights in "left multiply" (out, in) form, column biases.
    w1 = w1l.T                                              # (inter, C)
    w2 = w2l.T                                              # (C, inter)
    b1 = b1l.reshape(inter, 1)
    b2 = b2l.reshape(C, 1)

    slab_bytes = C * HW * x.dtype.itemsize
    use_fused = (not force_tiled) and slab_bytes <= _FUSED_SLAB_BYTES

    if use_fused:
        # ---- single-pass: x read from HBM exactly once --------------------
        w1g_t = w1g.T                                       # (inter, C)
        w2g_t = w2g.T                                       # (C, inter)
        b1g_c = b1g.reshape(inter, 1)
        b2g_c = b2g.reshape(C, 1)

        cost = pl.CostEstimate(
            flops=N * HW * (8 * C * inter + 6 * C),
            transcendentals=N * HW * C,
            bytes_accessed=(2 * N * C * HW + 4 * C * inter + 2 * C + 2 * inter) * 4,
        )
        vmem_limit = int(min(64 << 20, max(8 << 20, 16 * slab_bytes)))

        out = pl.pallas_call(
            mscam_fused_kernel,
            out_shape=jax.ShapeDtypeStruct((N, C, HW), x.dtype),
            grid=(N,),
            in_specs=[
                pl.BlockSpec((1, C, HW), lambda n: (n, 0, 0)),    # x slab
                pl.BlockSpec((inter, C), lambda n: (0, 0)),       # local w1
                pl.BlockSpec((inter, 1), lambda n: (0, 0)),       # local b1
                pl.BlockSpec((C, inter), lambda n: (0, 0)),       # local w2
                pl.BlockSpec((C, 1), lambda n: (0, 0)),           # local b2
                pl.BlockSpec((inter, C), lambda n: (0, 0)),       # global w1
                pl.BlockSpec((inter, 1), lambda n: (0, 0)),       # global b1
                pl.BlockSpec((C, inter), lambda n: (0, 0)),       # global w2
                pl.BlockSpec((C, 1), lambda n: (0, 0)),           # global b2
            ],
            out_specs=pl.BlockSpec((1, C, HW), lambda n: (n, 0, 0)),
            compiler_params=pltpu.CompilerParams(
                dimension_semantics=("parallel",),
                vmem_limit_bytes=vmem_limit,
            ),
            cost_estimate=cost,
        )(x, w1, b1, w2, b2, w1g_t, b1g_c, w2g_t, b2g_c)
        return out.reshape(N, C, H, W)

    # ---- tiled streaming path ---------------------------------------------
    # Global branch (GAP -> conv/BN -> ReLU -> conv/BN): ~2*C*inter MACs per
    # image, computed in the wrapper so the HW axis can be tiled; folded into
    # a per-batch (C, 1) bias together with the local-branch conv2 bias.
    g = jnp.mean(x, axis=2)                                 # (N, C) adaptive avg pool
    gl = jnp.maximum(g @ w1g + b1g, 0.0) @ w2g + b2g        # (N, C)
    b2n = gl.reshape(N, C, 1) + b2.reshape(1, C, 1)         # per-batch folded bias

    tile = _pick_tile_hw(HW, C)
    grid = (N, HW // tile)

    cost = pl.CostEstimate(
        flops=N * HW * (4 * C * inter + 4 * C),
        transcendentals=N * HW * C,
        bytes_accessed=(2 * N * C * HW + N * C + 2 * C * inter + 2 * C + inter) * 4,
    )
    vmem_limit = int(min(64 << 20, max(4 << 20, 16 * C * tile * 4)))

    out = pl.pallas_call(
        mscam_tiled_kernel,
        out_shape=jax.ShapeDtypeStruct((N, C, HW), x.dtype),
        grid=grid,
        in_specs=[
            pl.BlockSpec((1, C, tile), lambda n, t: (n, 0, t)),   # x slab
            pl.BlockSpec((inter, C), lambda n, t: (0, 0)),        # w1 (resident)
            pl.BlockSpec((inter, 1), lambda n, t: (0, 0)),        # b1
            pl.BlockSpec((C, inter), lambda n, t: (0, 0)),        # w2
            pl.BlockSpec((1, C, 1), lambda n, t: (n, 0, 0)),      # per-batch bias
        ],
        out_specs=pl.BlockSpec((1, C, tile), lambda n, t: (n, 0, t)),
        compiler_params=pltpu.CompilerParams(
            dimension_semantics=("parallel", "parallel"),
            vmem_limit_bytes=vmem_limit,
        ),
        cost_estimate=cost,
    )(x, w1, b1, w2, b2n)
    return out.reshape(N, C, H, W)


def fold_bn(w, b, gamma, beta, mean, var, eps=1e-5):
    """Fold eval-mode BatchNorm into a preceding 1x1 conv (matmul) layer.

    w: (C_in, C_out), b: (C_out,). BN stats are over C_out.
    """
    scale = gamma / jnp.sqrt(var + eps)
    return w * scale[None, :], (b - mean) * scale + beta


def make_params(channels=64, r=4, key=jax.random.PRNGKey(0)):
    inter = channels // r
    keys = jax.random.split(key, 16)

    def conv_w(k, cin, cout):
        return jax.random.normal(k, (cin, cout), jnp.float32) * 0.1

    def bn_params(k, c):
        k1, k2, k3, k4 = jax.random.split(k, 4)
        gamma = 1.0 + 0.1 * jax.random.normal(k1, (c,), jnp.float32)
        beta = 0.1 * jax.random.normal(k2, (c,), jnp.float32)
        mean = 0.1 * jax.random.normal(k3, (c,), jnp.float32)
        var = 1.0 + 0.1 * jax.random.uniform(k4, (c,), jnp.float32)
        return gamma, beta, mean, var

    # local branch
    w1l = conv_w(keys[0], channels, inter)
    b1l = 0.1 * jax.random.normal(keys[1], (inter,), jnp.float32)
    w2l = conv_w(keys[2], inter, channels)
    b2l = 0.1 * jax.random.normal(keys[3], (channels,), jnp.float32)
    w1l, b1l = fold_bn(w1l, b1l, *bn_params(keys[4], inter))
    w2l, b2l = fold_bn(w2l, b2l, *bn_params(keys[5], channels))

    # global branch
    w1g = conv_w(keys[6], channels, inter)
    b1g = 0.1 * jax.random.normal(keys[7], (inter,), jnp.float32)
    w2g = conv_w(keys[8], inter, channels)
    b2g = 0.1 * jax.random.normal(keys[9], (channels,), jnp.float32)
    w1g, b1g = fold_bn(w1g, b1g, *bn_params(keys[10], inter))
    w2g, b2g = fold_bn(w2g, b2g, *bn_params(keys[11], channels))

    return (w1l, b1l.reshape(1, -1), w2l, b2l.reshape(1, -1),
            w1g, b1g.reshape(1, -1), w2g, b2g.reshape(1, -1))


def ms_cam_ref(x_nchw, params):
    """Pure-JAX reference of the same folded-BN forward pass."""
    (w1l, b1l, w2l, b2l, w1g, b1g, w2g, b2g) = params
    N, C, H, W = x_nchw.shape
    x = jnp.transpose(x_nchw, (0, 2, 3, 1)).reshape(N, H * W, C)

    xl = jnp.maximum(x @ w1l + b1l, 0.0) @ w2l + b2l
    g = jnp.mean(x, axis=1, keepdims=True)
    gl = jnp.maximum(g @ w1g + b1g, 0.0) @ w2g + b2g
    out = x * jax.nn.sigmoid(xl + gl)
    return jnp.transpose(out.reshape(N, H, W, C), (0, 3, 1, 2))


if __name__ == "__main__":
    channels, r = 64, 4
    N, H, W = 2, 16, 16

    key = jax.random.PRNGKey(0)
    kx, kp = jax.random.split(key)
    x = jax.random.normal(kx, (N, channels, H, W), jnp.float32)
    params = make_params(channels=channels, r=r, key=kp)

    ref = ms_cam_ref(x, params)

    # fused single-pass path (auto-selected at this size).
    out_fused = jax.block_until_ready(ms_cam_pallas(x, params))
    assert out_fused.shape == x.shape
    assert jnp.allclose(out_fused, ref, atol=5e-5, rtol=5e-5)

    # tiled streaming path (auto-selected for large images; forced here for coverage).
    out_tiled = jax.block_until_ready(ms_cam_pallas(x, params, force_tiled=True))
    assert jnp.allclose(out_tiled, ref, atol=5e-5, rtol=5e-5)

    print("KERNEL_OK")
</pallas_src>

<mosaic_0001>
module attributes {stable_mosaic.version = 11 : i64} {
  func.func @mscam_fused_kernel(%arg0: i32, %arg1: memref<1x64x256xf32, #tpu.memory_space<vmem>>, %arg2: memref<16x64xf32, #tpu.memory_space<vmem>>, %arg3: memref<16x1xf32, #tpu.memory_space<vmem>>, %arg4: memref<64x16xf32, #tpu.memory_space<vmem>>, %arg5: memref<64x1xf32, #tpu.memory_space<vmem>>, %arg6: memref<16x64xf32, #tpu.memory_space<vmem>>, %arg7: memref<16x1xf32, #tpu.memory_space<vmem>>, %arg8: memref<64x16xf32, #tpu.memory_space<vmem>>, %arg9: memref<64x1xf32, #tpu.memory_space<vmem>>, %arg10: memref<1x64x256xf32, #tpu.memory_space<vmem>>) attributes {dimension_semantics = [#tpu.dimension_semantics<parallel>], iteration_bounds = array<i64: 2>, scalar_prefetch = 0 : i64, scratch_operands = 0 : i64, tpu.core_type = #tpu.core_type<tc>, window_params = [{transform_indices = @transform_0, window_bounds = array<i64: 1, 64, 256>}, {pipeline_mode = #tpu.pipeline_mode<synchronous>, transform_indices = @transform_1, window_bounds = array<i64: 16, 64>}, {pipeline_mode = #tpu.pipeline_mode<synchronous>, transform_indices = @transform_2, window_bounds = array<i64: 16, 1>}, {pipeline_mode = #tpu.pipeline_mode<synchronous>, transform_indices = @transform_3, window_bounds = array<i64: 64, 16>}, {pipeline_mode = #tpu.pipeline_mode<synchronous>, transform_indices = @transform_4, window_bounds = array<i64: 64, 1>}, {pipeline_mode = #tpu.pipeline_mode<synchronous>, transform_indices = @transform_5, window_bounds = array<i64: 16, 64>}, {pipeline_mode = #tpu.pipeline_mode<synchronous>, transform_indices = @transform_6, window_bounds = array<i64: 16, 1>}, {pipeline_mode = #tpu.pipeline_mode<synchronous>, transform_indices = @transform_7, window_bounds = array<i64: 64, 16>}, {pipeline_mode = #tpu.pipeline_mode<synchronous>, transform_indices = @transform_8, window_bounds = array<i64: 64, 1>}, {transform_indices = @transform_9, window_bounds = array<i64: 1, 64, 256>}]} {
    %c0 = arith.constant 0 : index
    %c0_0 = arith.constant 0 : index
    %c0_1 = arith.constant 0 : index
    %0 = vector.load %arg1[%c0, %c0_0, %c0_1] : memref<1x64x256xf32, #tpu.memory_space<vmem>>, vector<1x64x256xf32>
    %1 = vector.shape_cast %0 : vector<1x64x256xf32> to vector<64x256xf32>
    %c0_2 = arith.constant 0 : index
    %c0_3 = arith.constant 0 : index
    %2 = vector.load %arg6[%c0_2, %c0_3] : memref<16x64xf32, #tpu.memory_space<vmem>>, vector<16x64xf32>
    %cst = arith.constant dense<0.000000e+00> : vector<16x256xf32>
    %3 = tpu.matmul %2, %1, %cst {dimension_numbers = #tpu.dot_dimension_numbers<[1], [0], [0], [1], [0, 0, 1, 1], [], []>} : vector<16x64xf32>, vector<64x256xf32>, vector<16x256xf32> -> vector<16x256xf32>
    %cst_4 = arith.constant dense<0.000000e+00> : vector<16xf32>
    %4 = vector.multi_reduction <add>, %3, %cst_4 [1] : vector<16x256xf32> to vector<16xf32>
    %5 = vector.shape_cast %4 : vector<16xf32> to vector<16x1xf32>
    %cst_5 = arith.constant 2.560000e+02 : f32
    %6 = vector.broadcast %cst_5 : f32 to vector<16x1xf32>
    %7 = arith.divf %5, %6 : vector<16x1xf32>
    %c0_6 = arith.constant 0 : index
    %c0_7 = arith.constant 0 : index
    %8 = vector.load %arg7[%c0_6, %c0_7] : memref<16x1xf32, #tpu.memory_space<vmem>>, vector<16x1xf32>
    %9 = arith.addf %7, %8 : vector<16x1xf32>
    %cst_8 = arith.constant 0.000000e+00 : f32
    %10 = vector.broadcast %cst_8 : f32 to vector<16x1xf32>
    %11 = arith.maximumf %9, %10 : vector<16x1xf32>
    %c0_9 = arith.constant 0 : index
    %c0_10 = arith.constant 0 : index
    %12 = vector.load %arg8[%c0_9, %c0_10] : memref<64x16xf32, #tpu.memory_space<vmem>>, vector<64x16xf32>
    %13 = vector.shape_cast %11 : vector<16x1xf32> to vector<16x1xf32>
    %14 = vector.broadcast %13 : vector<16x1xf32> to vector<16x256xf32>
    %cst_11 = arith.constant dense<0.000000e+00> : vector<64x256xf32>
    %15 = tpu.matmul %12, %14, %cst_11 {dimension_numbers = #tpu.dot_dimension_numbers<[1], [0], [0], [1], [0, 0, 1, 1], [], []>} : vector<64x16xf32>, vector<16x256xf32>, vector<64x256xf32> -> vector<64x256xf32>
    %c0_12 = arith.constant 0 : index
    %c0_13 = arith.constant 0 : index
    %16 = vector.load %arg9[%c0_12, %c0_13] : memref<64x1xf32, #tpu.memory_space<vmem>>, vector<64x1xf32>
    %17 = vector.broadcast %16 : vector<64x1xf32> to vector<64x256xf32>
    %18 = arith.addf %15, %17 : vector<64x256xf32>
    %c0_14 = arith.constant 0 : index
    %c0_15 = arith.constant 0 : index
    %19 = vector.load %arg2[%c0_14, %c0_15] : memref<16x64xf32, #tpu.memory_space<vmem>>, vector<16x64xf32>
    %cst_16 = arith.constant dense<0.000000e+00> : vector<16x256xf32>
    %20 = tpu.matmul %19, %1, %cst_16 {dimension_numbers = #tpu.dot_dimension_numbers<[1], [0], [0], [1], [0, 0, 1, 1], [], []>} : vector<16x64xf32>, vector<64x256xf32>, vector<16x256xf32> -> vector<16x256xf32>
    %c0_17 = arith.constant 0 : index
    %c0_18 = arith.constant 0 : index
    %21 = vector.load %arg3[%c0_17, %c0_18] : memref<16x1xf32, #tpu.memory_space<vmem>>, vector<16x1xf32>
    %22 = vector.broadcast %21 : vector<16x1xf32> to vector<16x256xf32>
    %23 = arith.addf %20, %22 : vector<16x256xf32>
    %cst_19 = arith.constant 0.000000e+00 : f32
    %24 = vector.broadcast %cst_19 : f32 to vector<16x256xf32>
    %25 = arith.maximumf %23, %24 : vector<16x256xf32>
    %c0_20 = arith.constant 0 : index
    %c0_21 = arith.constant 0 : index
    %26 = vector.load %arg4[%c0_20, %c0_21] : memref<64x16xf32, #tpu.memory_space<vmem>>, vector<64x16xf32>
    %cst_22 = arith.constant dense<0.000000e+00> : vector<64x256xf32>
    %27 = tpu.matmul %26, %25, %cst_22 {dimension_numbers = #tpu.dot_dimension_numbers<[1], [0], [0], [1], [0, 0, 1, 1], [], []>} : vector<64x16xf32>, vector<16x256xf32>, vector<64x256xf32> -> vector<64x256xf32>
    %c0_23 = arith.constant 0 : index
    %c0_24 = arith.constant 0 : index
    %28 = vector.load %arg5[%c0_23, %c0_24] : memref<64x1xf32, #tpu.memory_space<vmem>>, vector<64x1xf32>
    %29 = vector.broadcast %28 : vector<64x1xf32> to vector<64x256xf32>
    %30 = arith.addf %27, %29 : vector<64x256xf32>
    %31 = arith.addf %30, %18 : vector<64x256xf32>
    %32 = arith.negf %31 : vector<64x256xf32>
    %33 = math.exp %32 : vector<64x256xf32>
    %cst_25 = arith.constant 1.000000e+00 : f32
    %34 = vector.broadcast %cst_25 : f32 to vector<64x256xf32>
    %35 = arith.addf %34, %33 : vector<64x256xf32>
    %36 = arith.divf %34, %35 : vector<64x256xf32>
    %37 = arith.mulf %1, %36 : vector<64x256xf32>
    %c0_26 = arith.constant 0 : index
    %c0_27 = arith.constant 0 : index
    %c0_28 = arith.constant 0 : index
    %38 = vector.load %arg10[%c0_26, %c0_27, %c0_28] : memref<1x64x256xf32, #tpu.memory_space<vmem>>, vector<1x64x256xf32>
    %39 = vector.shape_cast %38 : vector<1x64x256xf32> to vector<64x256xf32>
    %40 = vector.shape_cast %37 : vector<64x256xf32> to vector<1x64x256xf32>
    tpu.vector_store %arg10[%c0_26, %c0_27, %c0_28], %40 {strides = array<i32>} : memref<1x64x256xf32, #tpu.memory_space<vmem>>, vector<1x64x256xf32>,
    return
  }
  func.func @transform_0(%arg0: i32) -> (i32, i32, i32) {
    %c0_i32 = arith.constant 0 : i32
    %c0_i32_0 = arith.constant 0 : i32
    %c0_i32_1 = arith.constant 0 : i32
    return %arg0, %c0_i32, %c0_i32_0 : i32, i32, i32
  }
  func.func @transform_1(%arg0: i32) -> (i32, i32) {
    %c0_i32 = arith.constant 0 : i32
    %c0_i32_0 = arith.constant 0 : i32
    %c0_i32_1 = arith.constant 0 : i32
    return %c0_i32, %c0_i32_0 : i32, i32
  }
  func.func @transform_2(%arg0: i32) -> (i32, i32) {
    %c0_i32 = arith.constant 0 : i32
    %c0_i32_0 = arith.constant 0 : i32
    %c0_i32_1 = arith.constant 0 : i32
    return %c0_i32, %c0_i32_0 : i32, i32
  }
  func.func @transform_3(%arg0: i32) -> (i32, i32) {
    %c0_i32 = arith.constant 0 : i32
    %c0_i32_0 = arith.constant 0 : i32
    %c0_i32_1 = arith.constant 0 : i32
    return %c0_i32, %c0_i32_0 : i32, i32
  }
  func.func @transform_4(%arg0: i32) -> (i32, i32) {
    %c0_i32 = arith.constant 0 : i32
    %c0_i32_0 = arith.constant 0 : i32
    %c0_i32_1 = arith.constant 0 : i32
    return %c0_i32, %c0_i32_0 : i32, i32
  }
  func.func @transform_5(%arg0: i32) -> (i32, i32) {
    %c0_i32 = arith.constant 0 : i32
    %c0_i32_0 = arith.constant 0 : i32
    %c0_i32_1 = arith.constant 0 : i32
    return %c0_i32, %c0_i32_0 : i32, i32
  }
  func.func @transform_6(%arg0: i32) -> (i32, i32) {
    %c0_i32 = arith.constant 0 : i32
    %c0_i32_0 = arith.constant 0 : i32
    %c0_i32_1 = arith.constant 0 : i32
    return %c0_i32, %c0_i32_0 : i32, i32
  }
  func.func @transform_7(%arg0: i32) -> (i32, i32) {
    %c0_i32 = arith.constant 0 : i32
    %c0_i32_0 = arith.constant 0 : i32
    %c0_i32_1 = arith.constant 0 : i32
    return %c0_i32, %c0_i32_0 : i32, i32
  }
  func.func @transform_8(%arg0: i32) -> (i32, i32) {
    %c0_i32 = arith.constant 0 : i32
    %c0_i32_0 = arith.constant 0 : i32
    %c0_i32_1 = arith.constant 0 : i32
    return %c0_i32, %c0_i32_0 : i32, i32
  }
  func.func @transform_9(%arg0: i32) -> (i32, i32, i32) {
    %c0_i32 = arith.constant 0 : i32
    %c0_i32_0 = arith.constant 0 : i32
    %c0_i32_1 = arith.constant 0 : i32
    return %arg0, %c0_i32, %c0_i32_0 : i32, i32, i32
  }
}

</mosaic_0001>

<llo_original>
// kernel: tpu_custom_call.1
$region0: #{tpu_custom_call.1}
  #allocation0 [shape = 'u32[]', space=smem, size = 0x4, offset = 0x4, fixed_abs, tag = 'smem constant byte address 0x4 - core index']
  #allocation1 [shape = 'u32[144,128]{1,0:T(1,128)}', space=vmem, size = 0x12000, scoped, tag = 'internal scratch']
  %s0 = inlined_call_operand.vmem [shape: f32[2,64,256], index: 0, kind: input, shape index: {}]
  %s1 = inlined_call_operand.vmem [shape: f32[16,64], index: 1, kind: input, shape index: {}]
  %s2 = inlined_call_operand.vmem [shape: f32[16,1], index: 2, kind: input, shape index: {}]
  %s3 = inlined_call_operand.vmem [shape: f32[64,16], index: 3, kind: input, shape index: {}]
  %s4 = inlined_call_operand.vmem [shape: f32[64,1], index: 4, kind: input, shape index: {}]
  %s5 = inlined_call_operand.vmem [shape: f32[16,64], index: 5, kind: input, shape index: {}]
  %s6 = inlined_call_operand.vmem [shape: f32[16,1], index: 6, kind: input, shape index: {}]
  %s7 = inlined_call_operand.vmem [shape: f32[64,16], index: 7, kind: input, shape index: {}]
  %s8 = inlined_call_operand.vmem [shape: f32[64,1], index: 8, kind: input, shape index: {}]
  %s9 = inlined_call_operand.hbm [shape: f32[2,64,256], index: 9, kind: output, shape index: {}]
  %s10 = sld [smem:[#allocation0]]
  $region69: #{tpu_custom_call.1} parent=0
    _
  %s12 = ssub.s32 1, %s10
  %s13 = scalar_select 0, %s12, %s10
  $region1: #{tpu_custom_call.1} parent=0
    #allocation2 [shape = 'u8[131072]{0}', space=vmem, size = 0x20000, scoped, tag = 'output window, operand 0']
    #allocation3 [shape = 's32[2]{0}', space=sflag, size = 0x8, scoped, tag = 'scoped memory for tpu_custom_call.1']
    %14 = vsyncpa [#allocation3], 0
    %s15 = scalar_lea.sflag [#allocation3], 1
    %16 = vsyncpa %s15, 0
    loop: start=0, step=1, limit=4
    $region2: #{tpu_custom_call.1} parent=1 // loop_pre_header
      _
    $region3: #{tpu_custom_call.1} parent=1 // loop_header
      %s18 = sphi 0, %s22
      %p19 = scmp.ge.s32.totalorder %s18, 4
      %s28 = sphi 0, %s30
      %s31 = sphi 0, %s28
      %s32 = sphi 0, %s31
      %s48 = sphi 0, %s32
      %s52 = sphi 0, %s52
      %s54 = sphi 0, %s52
      %s55 = sphi 0, %s54
      %s69 = sphi 0, %s55
      %s73 = sphi 0, %s73
      %s75 = sphi 0, %s73
      %s76 = sphi 0, %s75
      %s90 = sphi 0, %s76
      %s94 = sphi 0, %s94
      %s96 = sphi 0, %s94
      %s97 = sphi 0, %s96
      %s111 = sphi 0, %s97
      %s115 = sphi 0, %s115
      %s117 = sphi 0, %s115
      %s118 = sphi 0, %s117
      %s132 = sphi 0, %s118
      %s136 = sphi 0, %s136
      %s138 = sphi 0, %s136
      %s139 = sphi 0, %s138
      %s153 = sphi 0, %s139
      %s157 = sphi 0, %s157
      %s159 = sphi 0, %s157
      %s160 = sphi 0, %s159
      %s174 = sphi 0, %s160
      %s178 = sphi 0, %s178
      %s180 = sphi 0, %s178
      %s181 = sphi 0, %s180
      %s195 = sphi 0, %s181
      %s199 = sphi 0, %s199
      %s201 = sphi 0, %s199
      %s202 = sphi 0, %s201
      %s216 = sphi 0, %s202
      %s222 = sphi 0, %s224
      %s225 = sphi 0, %s222
      %s226 = sphi 0, %s225
      %s242 = sphi 0, %s226
    $region4: #{tpu_custom_call.1} parent=1 // loop_header_branch
      %21 = sbr.rel (%p19) target = $region8
    $region5: #{tpu_custom_call.1} parent=1 // loop_body
      %s23 = ssub.s32 %s18, 1
      %s24 = ssub.s32 %s18, 2
      %s25 = sadd.s32 %s18, 1
      %s26 = ssub.s32 %s18, %s25
      %p27 = scmp.eq.s32.totalorder %s26, 0
      %s29 = sadd.s32 %s28, 1
      %s30 = scalar_select %p27, %s28, %s29
      %p33 = pneg %p27
      %p34 = scmp.eq.s32.totalorder %s18, 1
      %p35 = por %p33, %p34
      %p36 = scmp.ne.s32.totalorder %s28, %s31
      %p37 = scmp.eq.s32.totalorder %s18, 0
      %p38 = por %p36, %p37
      %p39 = scmp.ne.s32.totalorder %s28, %s31
      %p40 = scmp.eq.s32.totalorder %s23, 1
      %p41 = por %p39, %p40
      %p42 = scmp.ne.s32.totalorder %s31, %s32
      %p43 = scmp.eq.s32.totalorder %s23, 0
      %p44 = por %p42, %p43
      %p45 = scmp.ne.s32.totalorder %s31, %s32
      %p46 = scmp.eq.s32.totalorder %s24, 1
      %p47 = por %p45, %p46
      %p49 = scmp.ne.s32.totalorder %s32, %s48
      %p50 = scmp.eq.s32.totalorder %s24, 0
      %p51 = por %p49, %p50
      %s53 = sadd.s32 %s52, 1
      %p56 = scmp.eq.s32.totalorder %s18, 1
      %p57 = scmp.ne.s32.totalorder %s52, %s54
      %p58 = scmp.eq.s32.totalorder %s18, 0
      %p59 = por %p57, %p58
      %p60 = scmp.ne.s32.totalorder %s52, %s54
      %p61 = scmp.eq.s32.totalorder %s23, 1
      %p62 = por %p60, %p61
      %p63 = scmp.ne.s32.totalorder %s54, %s55
      %p64 = scmp.eq.s32.totalorder %s23, 0
      %p65 = por %p63, %p64
      %p66 = scmp.ne.s32.totalorder %s54, %s55
      %p67 = scmp.eq.s32.totalorder %s24, 1
      %p68 = por %p66, %p67
      %p70 = scmp.ne.s32.totalorder %s55, %s69
      %p71 = scmp.eq.s32.totalorder %s24, 0
      %p72 = por %p70, %p71
      %s74 = sadd.s32 %s73, 1
      %p77 = scmp.eq.s32.totalorder %s18, 1
      %p78 = scmp.ne.s32.totalorder %s73, %s75
      %p79 = scmp.eq.s32.totalorder %s18, 0
      %p80 = por %p78, %p79
      %p81 = scmp.ne.s32.totalorder %s73, %s75
      %p82 = scmp.eq.s32.totalorder %s23, 1
      %p83 = por %p81, %p82
      %p84 = scmp.ne.s32.totalorder %s75, %s76
      %p85 = scmp.eq.s32.totalorder %s23, 0
      %p86 = por %p84, %p85
      %p87 = scmp.ne.s32.totalorder %s75, %s76
      %p88 = scmp.eq.s32.totalorder %s24, 1
      %p89 = por %p87, %p88
      %p91 = scmp.ne.s32.totalorder %s76, %s90
      %p92 = scmp.eq.s32.totalorder %s24, 0
      %p93 = por %p91, %p92
      %s95 = sadd.s32 %s94, 1
      %p98 = scmp.eq.s32.totalorder %s18, 1
      %p99 = scmp.ne.s32.totalorder %s94, %s96
      %p100 = scmp.eq.s32.totalorder %s18, 0
      %p101 = por %p99, %p100
      %p102 = scmp.ne.s32.totalorder %s94, %s96
      %p103 = scmp.eq.s32.totalorder %s23, 1
      %p104 = por %p102, %p103
      %p105 = scmp.ne.s32.totalorder %s96, %s97
      %p106 = scmp.eq.s32.totalorder %s23, 0
      %p107 = por %p105, %p106
      %p108 = scmp.ne.s32.totalorder %s96, %s97
      %p109 = scmp.eq.s32.totalorder %s24, 1
      %p110 = por %p108, %p109
      %p112 = scmp.ne.s32.totalorder %s97, %s111
      %p113 = scmp.eq.s32.totalorder %s24, 0
      %p114 = por %p112, %p113
      %s116 = sadd.s32 %s115, 1
      %p119 = scmp.eq.s32.totalorder %s18, 1
      %p120 = scmp.ne.s32.totalorder %s115, %s117
      %p121 = scmp.eq.s32.totalorder %s18, 0
      %p122 = por %p120, %p121
      %p123 = scmp.ne.s32.totalorder %s115, %s117
      %p124 = scmp.eq.s32.totalorder %s23, 1
      %p125 = por %p123, %p124
      %p126 = scmp.ne.s32.totalorder %s117, %s118
      %p127 = scmp.eq.s32.totalorder %s23, 0
      %p128 = por %p126, %p127
      %p129 = scmp.ne.s32.totalorder %s117, %s118
      %p130 = scmp.eq.s32.totalorder %s24, 1
      %p131 = por %p129, %p130
      %p133 = scmp.ne.s32.totalorder %s118, %s132
      %p134 = scmp.eq.s32.totalorder %s24, 0
      %p135 = por %p133, %p134
      %s137 = sadd.s32 %s136, 1
      %p140 = scmp.eq.s32.totalorder %s18, 1
      %p141 = scmp.ne.s32.totalorder %s136, %s138
      %p142 = scmp.eq.s32.totalorder %s18, 0
      %p143 = por %p141, %p142
      %p144 = scmp.ne.s32.totalorder %s136, %s138
      %p145 = scmp.eq.s32.totalorder %s23, 1
      %p146 = por %p144, %p145
      %p147 = scmp.ne.s32.totalorder %s138, %s139
      %p148 = scmp.eq.s32.totalorder %s23, 0
      %p149 = por %p147, %p148
      %p150 = scmp.ne.s32.totalorder %s138, %s139
      %p151 = scmp.eq.s32.totalorder %s24, 1
      %p152 = por %p150, %p151
      %p154 = scmp.ne.s32.totalorder %s139, %s153
      %p155 = scmp.eq.s32.totalorder %s24, 0
      %p156 = por %p154, %p155
      %s158 = sadd.s32 %s157, 1
      %p161 = scmp.eq.s32.totalorder %s18, 1
      %p162 = scmp.ne.s32.totalorder %s157, %s159
      %p163 = scmp.eq.s32.totalorder %s18, 0
      %p164 = por %p162, %p163
      %p165 = scmp.ne.s32.totalorder %s157, %s159
      %p166 = scmp.eq.s32.totalorder %s23, 1
      %p167 = por %p165, %p166
      %p168 = scmp.ne.s32.totalorder %s159, %s160
      %p169 = scmp.eq.s32.totalorder %s23, 0
      %p170 = por %p168, %p169
      %p171 = scmp.ne.s32.totalorder %s159, %s160
      %p172 = scmp.eq.s32.totalorder %s24, 1
      %p173 = por %p171, %p172
      %p175 = scmp.ne.s32.totalorder %s160, %s174
      %p176 = scmp.eq.s32.totalorder %s24, 0
      %p177 = por %p175, %p176
      %s179 = sadd.s32 %s178, 1
      %p182 = scmp.eq.s32.totalorder %s18, 1
      %p183 = scmp.ne.s32.totalorder %s178, %s180
      %p184 = scmp.eq.s32.totalorder %s18, 0
      %p185 = por %p183, %p184
      %p186 = scmp.ne.s32.totalorder %s178, %s180
      %p187 = scmp.eq.s32.totalorder %s23, 1
      %p188 = por %p186, %p187
      %p189 = scmp.ne.s32.totalorder %s180, %s181
      %p190 = scmp.eq.s32.totalorder %s23, 0
      %p191 = por %p189, %p190
      %p192 = scmp.ne.s32.totalorder %s180, %s181
      %p193 = scmp.eq.s32.totalorder %s24, 1
      %p194 = por %p192, %p193
      %p196 = scmp.ne.s32.totalorder %s181, %s195
      %p197 = scmp.eq.s32.totalorder %s24, 0
      %p198 = por %p196, %p197
      %s200 = sadd.s32 %s199, 1
      %p203 = scmp.eq.s32.totalorder %s18, 1
      %p204 = scmp.ne.s32.totalorder %s199, %s201
      %p205 = scmp.eq.s32.totalorder %s18, 0
      %p206 = por %p204, %p205
      %p207 = scmp.ne.s32.totalorder %s199, %s201
      %p208 = scmp.eq.s32.totalorder %s23, 1
      %p209 = por %p207, %p208
      %p210 = scmp.ne.s32.totalorder %s201, %s202
      %p211 = scmp.eq.s32.totalorder %s23, 0
      %p212 = por %p210, %p211
      %p213 = scmp.ne.s32.totalorder %s201, %s202
      %p214 = scmp.eq.s32.totalorder %s24, 1
      %p215 = por %p213, %p214
      %p217 = scmp.ne.s32.totalorder %s202, %s216
      %p218 = scmp.eq.s32.totalorder %s24, 0
      %p219 = por %p217, %p218
      %s220 = ssub.s32 %s18, %s25
      %p221 = scmp.eq.s32.totalorder %s220, 0
      %s223 = sadd.s32 %s222, 1
      %s224 = scalar_select %p221, %s222, %s223
      %p227 = pneg %p221
      %p228 = scmp.eq.s32.totalorder %s18, 1
      %p229 = por %p227, %p228
      %p230 = scmp.ne.s32.totalorder %s222, %s225
      %p231 = scmp.eq.s32.totalorder %s18, 0
      %p232 = por %p230, %p231
      %p233 = scmp.ne.s32.totalorder %s222, %s225
      %p234 = scmp.eq.s32.totalorder %s23, 1
      %p235 = por %p233, %p234
      %p236 = scmp.ne.s32.totalorder %s225, %s226
      %p237 = scmp.eq.s32.totalorder %s23, 0
      %p238 = por %p236, %p237
      %p239 = scmp.ne.s32.totalorder %s225, %s226
      %p240 = scmp.eq.s32.totalorder %s24, 1
      %p241 = por %p239, %p240
      %p243 = scmp.ne.s32.totalorder %s226, %s242
      %p244 = scmp.eq.s32.totalorder %s24, 0
      %p245 = por %p243, %p244
      %p246 = scmp.le.s32.totalorder 1, %s18
      %p247 = scmp.lt.s32.totalorder %s18, 3
      %p248 = pnand %p246, %p247
      %p249 = pneg %p248
      // Predicated region
      $region9: #{tpu_custom_call.1} parent=5 // pred_check
        _
      $region10: #{tpu_custom_call.1} parent=5 // pred_check_branch
        %251 = sbr.rel (%p248) target = $region12
      $region11: #{tpu_custom_call.1} parent=5 // pred_region
        %s252 = ssub.s32 %s18, 1
        // Predicated region
        $region13: #{tpu_custom_call.1} parent=11 // pred_check
          %p253 = pneg %p65
        $region14: #{tpu_custom_call.1} parent=11 // pred_check_branch
          %255 = sbr.rel (%p253) target = $region16
        $region15: #{tpu_custom_call.1} parent=11 // pred_region
          _
        $region16: #{tpu_custom_call.1} parent=11 // pred_fallthru
          _
        // Predicated region
        $region17: #{tpu_custom_call.1} parent=11 // pred_check
          %p256 = pneg %p86
        $region18: #{tpu_custom_call.1} parent=11 // pred_check_branch
          %258 = sbr.rel (%p256) target = $region20
        $region19: #{tpu_custom_call.1} parent=11 // pred_region
          _
        $region20: #{tpu_custom_call.1} parent=11 // pred_fallthru
          _
        // Predicated region
        $region21: #{tpu_custom_call.1} parent=11 // pred_check
          %p259 = pneg %p107
        $region22: #{tpu_custom_call.1} parent=11 // pred_check_branch
          %261 = sbr.rel (%p259) target = $region24
        $region23: #{tpu_custom_call.1} parent=11 // pred_region
          _
        $region24: #{tpu_custom_call.1} parent=11 // pred_fallthru
          _
        // Predicated region
        $region25: #{tpu_custom_call.1} parent=11 // pred_check
          %p262 = pneg %p128
        $region26: #{tpu_custom_call.1} parent=11 // pred_check_branch
          %264 = sbr.rel (%p262) target = $region28
        $region27: #{tpu_custom_call.1} parent=11 // pred_region
          _
        $region28: #{tpu_custom_call.1} parent=11 // pred_fallthru
          _
        // Predicated region
        $region29: #{tpu_custom_call.1} parent=11 // pred_check
          %p265 = pneg %p149
        $region30: #{tpu_custom_call.1} parent=11 // pred_check_branch
          %267 = sbr.rel (%p265) target = $region32
        $region31: #{tpu_custom_call.1} parent=11 // pred_region
          _
        $region32: #{tpu_custom_call.1} parent=11 // pred_fallthru
          _
        // Predicated region
        $region33: #{tpu_custom_call.1} parent=11 // pred_check
          %p268 = pneg %p170
        $region34: #{tpu_custom_call.1} parent=11 // pred_check_branch
          %270 = sbr.rel (%p268) target = $region36
        $region35: #{tpu_custom_call.1} parent=11 // pred_region
          _
        $region36: #{tpu_custom_call.1} parent=11 // pred_fallthru
          _
        // Predicated region
        $region37: #{tpu_custom_call.1} parent=11 // pred_check
          %p271 = pneg %p191
        $region38: #{tpu_custom_call.1} parent=11 // pred_check_branch
          %273 = sbr.rel (%p271) target = $region40
        $region39: #{tpu_custom_call.1} parent=11 // pred_region
          _
        $region40: #{tpu_custom_call.1} parent=11 // pred_fallthru
          _
        // Predicated region
        $region41: #{tpu_custom_call.1} parent=11 // pred_check
          %p274 = pneg %p212
        $region42: #{tpu_custom_call.1} parent=11 // pred_check_branch
          %276 = sbr.rel (%p274) target = $region44
        $region43: #{tpu_custom_call.1} parent=11 // pred_region
          _
        $region44: #{tpu_custom_call.1} parent=11 // pred_fallthru
          _
      $region12: #{tpu_custom_call.1} parent=5 // pred_fallthru
        _
      %p277 = scmp.lt.s32.totalorder %s18, 2
      // Predicated region
      $region45: #{tpu_custom_call.1} parent=5 // pred_check
        %p278 = pneg %p277
      $region46: #{tpu_custom_call.1} parent=5 // pred_check_branch
        %280 = sbr.rel (%p278) target = $region48
      $region47: #{tpu_custom_call.1} parent=5 // pred_region
        // Predicated region
        $region49: #{tpu_custom_call.1} parent=47 // pred_check
          %p281 = pneg %p38
        $region50: #{tpu_custom_call.1} parent=47 // pred_check_branch
          %283 = sbr.rel (%p281) target = $region52
        $region51: #{tpu_custom_call.1} parent=47 // pred_region
          %p284 = scmp.lt.s32.totalorder %s18, 1
          %s285 = scalar_select %p284, %s18, 1
          %s286 = smul.addr %s285, 16
          %s287 = smul.addr %s286, 8
          %s288 = scalar_lea.vmem %s0, %s287
        $region52: #{tpu_custom_call.1} parent=47 // pred_fallthru
          _
      $region48: #{tpu_custom_call.1} parent=5 // pred_fallthru
        _
      %p289 = scmp.le.s32.totalorder 1, %s18
      %p290 = scmp.lt.s32.totalorder %s18, 3
      %p291 = pnand %p289, %p290
      %p292 = pneg %p291
      // Predicated region
      $region53: #{tpu_custom_call.1} parent=5 // pred_check
        _
      $region54: #{tpu_custom_call.1} parent=5 // pred_check_branch
        %294 = sbr.rel (%p291) target = $region56
      $region55: #{tpu_custom_call.1} parent=5 // pred_region
        %s295 = ssub.s32 %s18, 1
        %p296 = scmp.lt.s32.totalorder %s23, 1
        %s297 = scalar_select %p296, %s23, 1
        %s298 = smul.addr %s297, 16
        %s299 = smul.addr %s298, 8
        %s300 = scalar_lea.vmem %s0, %s299
        %p301 = pneg %p44
        %p302 = pneg %p41
        %p303 = pneg %p65
        %p304 = pneg %p62
        %p305 = pneg %p86
        %p306 = pneg %p83
        %p307 = pneg %p107
        %p308 = pneg %p104
        %p309 = pneg %p128
        %p310 = pneg %p125
        %p311 = pneg %p149
        %p312 = pneg %p146
        %p313 = pneg %p170
        %p314 = pneg %p167
        %p315 = pneg %p191
        %p316 = pneg %p188
        %p317 = pneg %p212
        %p318 = pneg %p209
        %p319 = pneg %p238
        %p320 = pneg %p235
        %s321 = sand.u32 %s225, 1
        %s322 = scalar_lea.sflag [#allocation3], %s321
        %s323 = sand.u32 %s225, 1
        %s324 = smul.addr %s323, 128
        %s325 = scalar_lea.vmem [#allocation2], %s324
        %p326 = scmp.lt.s32.totalorder %s23, 1
        %s327 = scalar_select %p326, %s23, 1
        %s328 = smul.addr %s327, 16
        %s329 = smul.addr %s328, 8
        %s330 = scalar_lea.vmem %s0, %s329
        %v331 = vld [vmem:[%s330] sm:$0xff]
        %v332 = vld [vmem:[%s330 + $0x8] sm:$0xff]
        %v333 = vld [vmem:[%s330 + $0x10] sm:$0xff]
        %v334 = vld [vmem:[%s330 + $0x18] sm:$0xff]
        %v335 = vld [vmem:[%s330 + $0x20] sm:$0xff]
        %v336 = vld [vmem:[%s330 + $0x28] sm:$0xff]
        %v337 = vld [vmem:[%s330 + $0x30] sm:$0xff]
        %v338 = vld [vmem:[%s330 + $0x38] sm:$0xff]
        %v339 = vld [vmem:[%s330 + $0x40] sm:$0xff]
        %v340 = vld [vmem:[%s330 + $0x48] sm:$0xff]
        %v341 = vld [vmem:[%s330 + $0x50] sm:$0xff]
        %v342 = vld [vmem:[%s330 + $0x58] sm:$0xff]
        %v343 = vld [vmem:[%s330 + $0x60] sm:$0xff]
        %v344 = vld [vmem:[%s330 + $0x68] sm:$0xff]
        %v345 = vld [vmem:[%s330 + $0x70] sm:$0xff]
        %v346 = vld [vmem:[%s330 + $0x78] sm:$0xff]
        %v347 = vld [vmem:[%s5] sm:$0xff]
        %v348 = vld [vmem:[%s5 + $0x8] sm:$0xff]
        %vm349 = vcmask 523264
        %v351 = vsel %vm349, %v347, 0
        %v354 = vsel %vm349, %v348, 0
        %356 = vmatprep.subr.mxu0 0.0
        %357 = vmatpush1.msra.mxu0 0.0
        %358 = vmatprep.subr.mxu0 0.0
        %359 = vmatpush1.msra.mxu0 0.0
        %360 = vmatprep.subr.mxu0 0.0
        %361 = vmatpush1.msra.mxu0 0.0
        %362 = vmatprep.subr.mxu0 0.0
        %363 = vmatpush1.msra.mxu0 0.0
        %364 = vmatprep.subr.mxu0 0.0
        %365 = vmatpush1.msra.mxu0 0.0
        %366 = vmatprep.subr.mxu0 0.0
        %367 = vmatpush1.msra.mxu0 0.0
        %368 = vmatprep.subr.mxu0 0.0
        %369 = vmatpush1.msra.mxu0 0.0
        %370 = vmatprep.subr.mxu0 0.0
        %371 = vmatpush1.msra.mxu0 0.0
        %372 = vmatprep.subr.mxu0 %v346
        %373 = vmatpush1.msra.mxu0 %v345
        %374 = vmatprep.subr.mxu0 %v344
        %375 = vmatpush1.msra.mxu0 %v343
        %376 = vmatprep.subr.mxu0 %v342
        %377 = vmatpush1.msra.mxu0 %v341
        %378 = vmatprep.subr.mxu0 %v340
        %379 = vmatpush1.msra.mxu0 %v339
        %380 = vmatprep.subr.mxu0 %v338
        %381 = vmatpush1.msra.mxu0 %v337
        %382 = vmatprep.subr.mxu0 %v336
        %383 = vmatpush1.msra.mxu0 %v335
        %384 = vmatprep.subr.mxu0 %v334
        %385 = vmatpush1.msra.mxu0 %v333
        %386 = vmatprep.subr.mxu0 %v332
        %387 = vmatpush1.msra.mxu0 %v331
        %388 = vmatprep.subr.mxu0 0.0
        %389 = vmatpush2.msra.mxu0 0.0
        %390 = vmatprep.subr.mxu0 0.0
        %391 = vmatpush2.msra.mxu0 0.0
        %392 = vmatprep.subr.mxu0 0.0
        %393 = vmatpush2.msra.mxu0 0.0
        %394 = vmatprep.subr.mxu0 0.0
        %395 = vmatpush2.msra.mxu0 0.0
        %396 = vmatprep.subr.mxu0 0.0
        %397 = vmatpush2.msra.mxu0 0.0
        %398 = vmatprep.subr.mxu0 0.0
        %399 = vmatpush2.msra.mxu0 0.0
        %400 = vmatprep.subr.mxu0 0.0
        %401 = vmatpush2.msra.mxu0 0.0
        %402 = vmatprep.subr.mxu0 0.0
        %403 = vmatpush2.msra.mxu0 0.0
        %404 = vmatprep.subr.mxu0 0.0
        %405 = vmatpush2.msra.mxu0 0.0
        %406 = vmatprep.subr.mxu0 0.0
        %407 = vmatpush2.msra.mxu0 0.0
        %408 = vmatprep.subr.mxu0 0.0
        %409 = vmatpush2.msra.mxu0 0.0
        %410 = vmatprep.subr.mxu0 0.0
        %411 = vmatpush2.msra.mxu0 0.0
        %412 = vmatprep.subr.mxu0 0.0
        %413 = vmatpush2.msra.mxu0 0.0
        %414 = vmatprep.subr.mxu0 0.0
        %415 = vmatpush2.msra.mxu0 0.0
        %416 = vmatprep.subr.mxu0 0.0
        %417 = vmatpush2.msra.mxu0 0.0
        %418 = vmatprep.subr.mxu0 0.0
        %419 = vmatpush2.msra.mxu0 0.0
        %420 = vmatprep.mubr.f32.mxu0 0.0
        %421 = vmatmul.mubr.f32.gmra.mxu0 %v351
        %v422 = vpop.f32.mrf.mxu0
        %v423 = vadd.f32 0.0, %v422
        %v424 = vpop.f32.mrf.mxu0
        %v425 = vadd.f32 0.0, %v424
        %426 = vmatprep.mubr.f32.mxu0 0.0
        %427 = vmatmul.mubr.f32.gmra.mxu0 %v354
        %v428 = vpop.f32.mrf.mxu0
        %v429 = vadd.f32 0.0, %v428
        %v430 = vpop.f32.mrf.mxu0
        %v431 = vadd.f32 0.0, %v430
        %432 = vdwg.mxu0
        %v433 = vadd.f32 %v423, %v425
        %434 = vadd.xlane.f32.xlu0 %v433
        %v435 = vpop.xlane.xlu0 %434
        %v436 = vadd.f32 %v429, %v431
        %437 = vadd.xlane.f32.xlu0 %v436
        %v438 = vpop.xlane.xlu0 %437
        %v439 = vrcp.pop 256.0
        %v440 = vmul.f32 %v435, %v439
        %v441 = vmul.f32 %v438, %v439
        %v442 = vld [vmem:[%s6] sm:$0xff]
        %v443 = vld [vmem:[%s6 + $0x8] sm:$0xff]
        %v444 = vadd.f32 %v440, %v442
        %v445 = vadd.f32 %v441, %v443
        %v446 = vmax.f32 %v444, 0.0
        %v447 = vmax.f32 %v445, 0.0
        %v448 = vld [vmem:[%s7] sm:$0xff]
        %v449 = vld [vmem:[%s7 + $0x8] sm:$0xff]
        %v450 = vld [vmem:[%s7 + $0x10] sm:$0xff]
        %v451 = vld [vmem:[%s7 + $0x18] sm:$0xff]
        %v452 = vld [vmem:[%s7 + $0x20] sm:$0xff]
        %v453 = vld [vmem:[%s7 + $0x28] sm:$0xff]
        %v454 = vld [vmem:[%s7 + $0x30] sm:$0xff]
        %v455 = vld [vmem:[%s7 + $0x38] sm:$0xff]
        %457 = vset.pattern.permute.xlu0 0
        %458 = vperm.xlu0 %457, %v446
        %v459 = vpop.permute.xlu0 %458
        %462 = vset.pattern.permute.xlu0 0
        %463 = vperm.xlu0 %462, %v447
        %v464 = vpop.permute.xlu0 %463
        %v466 = vld [vmem:[%s8] sm:$0xff]
        %v467 = vld [vmem:[%s8 + $0x8] sm:$0xff]
        %v468 = vld [vmem:[%s8 + $0x10] sm:$0xff]
        %v469 = vld [vmem:[%s8 + $0x18] sm:$0xff]
        %v470 = vld [vmem:[%s8 + $0x20] sm:$0xff]
        %v471 = vld [vmem:[%s8 + $0x28] sm:$0xff]
        %v472 = vld [vmem:[%s8 + $0x30] sm:$0xff]
        %v473 = vld [vmem:[%s8 + $0x38] sm:$0xff]
        %475 = vset.pattern.permute.xlu0 0
        %476 = vperm.xlu0 %475, %v466
        %v477 = vpop.permute.xlu0 %476
        %480 = vset.pattern.permute.xlu0 0
        %481 = vperm.xlu0 %480, %v467
        %v482 = vpop.permute.xlu0 %481
        %485 = vset.pattern.permute.xlu0 0
        %486 = vperm.xlu0 %485, %v468
        %v487 = vpop.permute.xlu0 %486
        %490 = vset.pattern.permute.xlu0 0
        %491 = vperm.xlu0 %490, %v469
        %v492 = vpop.permute.xlu0 %491
        %495 = vset.pattern.permute.xlu0 0
        %496 = vperm.xlu0 %495, %v470
        %v497 = vpop.permute.xlu0 %496
        %500 = vset.pattern.permute.xlu0 0
        %501 = vperm.xlu0 %500, %v471
        %v502 = vpop.permute.xlu0 %501
        %505 = vset.pattern.permute.xlu0 0
        %506 = vperm.xlu0 %505, %v472
        %v507 = vpop.permute.xlu0 %506
        %510 = vset.pattern.permute.xlu0 0
        %511 = vperm.xlu0 %510, %v473
        %v512 = vpop.permute.xlu0 %511
        %vm514 = vcmask 130048
        %v516 = vsel %vm514, %v448, 0
        %v519 = vsel %vm514, %v449, 0
        %v522 = vsel %vm514, %v450, 0
        %v525 = vsel %vm514, %v451, 0
        %v528 = vsel %vm514, %v452, 0
        %v531 = vsel %vm514, %v453, 0
        %v534 = vsel %vm514, %v454, 0
        %v537 = vsel %vm514, %v455, 0
        %539 = vmatprep.subr.mxu0 0.0
        %540 = vmatpush1.msra.mxu0 0.0
        %541 = vmatprep.subr.mxu0 0.0
        %542 = vmatpush1.msra.mxu0 0.0
        %543 = vmatprep.subr.mxu0 0.0
        %544 = vmatpush1.msra.mxu0 0.0
        %545 = vmatprep.subr.mxu0 0.0
        %546 = vmatpush1.msra.mxu0 0.0
        %547 = vmatprep.subr.mxu0 0.0
        %548 = vmatpush1.msra.mxu0 0.0
        %549 = vmatprep.subr.mxu0 0.0
        %550 = vmatpush1.msra.mxu0 0.0
        %551 = vmatprep.subr.mxu0 0.0
        %552 = vmatpush1.msra.mxu0 0.0
        %553 = vmatprep.subr.mxu0 0.0
        %554 = vmatpush1.msra.mxu0 0.0
        %555 = vmatprep.subr.mxu0 0.0
        %556 = vmatpush1.msra.mxu0 0.0
        %557 = vmatprep.subr.mxu0 0.0
        %558 = vmatpush1.msra.mxu0 0.0
        %559 = vmatprep.subr.mxu0 0.0
        %560 = vmatpush1.msra.mxu0 0.0
        %561 = vmatprep.subr.mxu0 0.0
        %562 = vmatpush1.msra.mxu0 0.0
        %563 = vmatprep.subr.mxu0 0.0
        %564 = vmatpush1.msra.mxu0 0.0
        %565 = vmatprep.subr.mxu0 0.0
        %566 = vmatpush1.msra.mxu0 0.0
        %567 = vmatprep.subr.mxu0 %v464
        %568 = vmatpush1.msra.mxu0 %v464
        %569 = vmatprep.subr.mxu0 %v459
        %570 = vmatpush1.msra.mxu0 %v459
        %571 = vmatprep.subr.mxu0 0.0
        %572 = vmatpush2.msra.mxu0 0.0
        %573 = vmatprep.subr.mxu0 0.0
        %574 = vmatpush2.msra.mxu0 0.0
        %575 = vmatprep.subr.mxu0 0.0
        %576 = vmatpush2.msra.mxu0 0.0
        %577 = vmatprep.subr.mxu0 0.0
        %578 = vmatpush2.msra.mxu0 0.0
        %579 = vmatprep.subr.mxu0 0.0
        %580 = vmatpush2.msra.mxu0 0.0
        %581 = vmatprep.subr.mxu0 0.0
        %582 = vmatpush2.msra.mxu0 0.0
        %583 = vmatprep.subr.mxu0 0.0
        %584 = vmatpush2.msra.mxu0 0.0
        %585 = vmatprep.subr.mxu0 0.0
        %586 = vmatpush2.msra.mxu0 0.0
        %587 = vmatprep.subr.mxu0 0.0
        %588 = vmatpush2.msra.mxu0 0.0
        %589 = vmatprep.subr.mxu0 0.0
        %590 = vmatpush2.msra.mxu0 0.0
        %591 = vmatprep.subr.mxu0 0.0
        %592 = vmatpush2.msra.mxu0 0.0
        %593 = vmatprep.subr.mxu0 0.0
        %594 = vmatpush2.msra.mxu0 0.0
        %595 = vmatprep.subr.mxu0 0.0
        %596 = vmatpush2.msra.mxu0 0.0
        %597 = vmatprep.subr.mxu0 0.0
        %598 = vmatpush2.msra.mxu0 0.0
        %599 = vmatprep.subr.mxu0 0.0
        %600 = vmatpush2.msra.mxu0 0.0
        %601 = vmatprep.subr.mxu0 0.0
        %602 = vmatpush2.msra.mxu0 0.0
        %603 = vmatprep.mubr.f32.mxu0 0.0
        %604 = vmatmul.mubr.f32.gmra.mxu0 %v516
        %v605 = vpop.f32.mrf.mxu0
        %v606 = vadd.f32 %v477, %v605
        %v607 = vpop.f32.mrf.mxu0
        %v608 = vadd.f32 %v477, %v607
        %609 = vmatprep.mubr.f32.mxu0 0.0
        %610 = vmatmul.mubr.f32.gmra.mxu0 %v519
        %v611 = vpop.f32.mrf.mxu0
        %v612 = vadd.f32 %v482, %v611
        %v613 = vpop.f32.mrf.mxu0
        %v614 = vadd.f32 %v482, %v613
        %615 = vmatprep.mubr.f32.mxu0 0.0
        %616 = vmatmul.mubr.f32.gmra.mxu0 %v522
        %v617 = vpop.f32.mrf.mxu0
        %v618 = vadd.f32 %v487, %v617
        %v619 = vpop.f32.mrf.mxu0
        %v620 = vadd.f32 %v487, %v619
        %621 = vmatprep.mubr.f32.mxu0 0.0
        %622 = vmatmul.mubr.f32.gmra.mxu0 %v525
        %v623 = vpop.f32.mrf.mxu0
        %v624 = vadd.f32 %v492, %v623
        %v625 = vpop.f32.mrf.mxu0
        %v626 = vadd.f32 %v492, %v625
        %627 = vmatprep.mubr.f32.mxu0 0.0
        %628 = vmatmul.mubr.f32.gmra.mxu0 %v528
        %v629 = vpop.f32.mrf.mxu0
        %v630 = vadd.f32 %v497, %v629
        %v631 = vpop.f32.mrf.mxu0
        %v632 = vadd.f32 %v497, %v631
        %633 = vmatprep.mubr.f32.mxu0 0.0
        %634 = vmatmul.mubr.f32.gmra.mxu0 %v531
        %v635 = vpop.f32.mrf.mxu0
        %v636 = vadd.f32 %v502, %v635
        %v637 = vpop.f32.mrf.mxu0
        %v638 = vadd.f32 %v502, %v637
        %639 = vmatprep.mubr.f32.mxu0 0.0
        %640 = vmatmul.mubr.f32.gmra.mxu0 %v534
        %v641 = vpop.f32.mrf.mxu0
        %v642 = vadd.f32 %v507, %v641
        %v643 = vpop.f32.mrf.mxu0
        %v644 = vadd.f32 %v507, %v643
        %645 = vmatprep.mubr.f32.mxu0 0.0
        %646 = vmatmul.mubr.f32.gmra.mxu0 %v537
        %v647 = vpop.f32.mrf.mxu0
        %v648 = vadd.f32 %v512, %v647
        %v649 = vpop.f32.mrf.mxu0
        %v650 = vadd.f32 %v512, %v649
        %651 = vdwg.mxu0
        %v652 = vld [vmem:[%s1] sm:$0xff]
        %v653 = vld [vmem:[%s1 + $0x8] sm:$0xff]
        %v654 = vld [vmem:[%s2] sm:$0xff]
        %v655 = vld [vmem:[%s2 + $0x8] sm:$0xff]
        %657 = vset.pattern.permute.xlu0 0
        %658 = vperm.xlu0 %657, %v654
        %v659 = vpop.permute.xlu0 %658
        %662 = vset.pattern.permute.xlu0 0
        %663 = vperm.xlu0 %662, %v655
        %v664 = vpop.permute.xlu0 %663
        %v667 = vsel %vm349, %v652, 0
        %v670 = vsel %vm349, %v653, 0
        %672 = vmatprep.subr.mxu0 0.0
        %673 = vmatpush1.msra.mxu0 0.0
        %674 = vmatprep.subr.mxu0 0.0
        %675 = vmatpush1.msra.mxu0 0.0
        %676 = vmatprep.subr.mxu0 0.0
        %677 = vmatpush1.msra.mxu0 0.0
        %678 = vmatprep.subr.mxu0 0.0
        %679 = vmatpush1.msra.mxu0 0.0
        %680 = vmatprep.subr.mxu0 0.0
        %681 = vmatpush1.msra.mxu0 0.0
        %682 = vmatprep.subr.mxu0 0.0
        %683 = vmatpush1.msra.mxu0 0.0
        %684 = vmatprep.subr.mxu0 0.0
        %685 = vmatpush1.msra.mxu0 0.0
        %686 = vmatprep.subr.mxu0 0.0
        %687 = vmatpush1.msra.mxu0 0.0
        %688 = vmatprep.subr.mxu0 %v346
        %689 = vmatpush1.msra.mxu0 %v345
        %690 = vmatprep.subr.mxu0 %v344
        %691 = vmatpush1.msra.mxu0 %v343
        %692 = vmatprep.subr.mxu0 %v342
        %693 = vmatpush1.msra.mxu0 %v341
        %694 = vmatprep.subr.mxu0 %v340
        %695 = vmatpush1.msra.mxu0 %v339
        %696 = vmatprep.subr.mxu0 %v338
        %697 = vmatpush1.msra.mxu0 %v337
        %698 = vmatprep.subr.mxu0 %v336
        %699 = vmatpush1.msra.mxu0 %v335
        %700 = vmatprep.subr.mxu0 %v334
        %701 = vmatpush1.msra.mxu0 %v333
        %702 = vmatprep.subr.mxu0 %v332
        %703 = vmatpush1.msra.mxu0 %v331
        %704 = vmatprep.subr.mxu0 0.0
        %705 = vmatpush2.msra.mxu0 0.0
        %706 = vmatprep.subr.mxu0 0.0
        %707 = vmatpush2.msra.mxu0 0.0
        %708 = vmatprep.subr.mxu0 0.0
        %709 = vmatpush2.msra.mxu0 0.0
        %710 = vmatprep.subr.mxu0 0.0
        %711 = vmatpush2.msra.mxu0 0.0
        %712 = vmatprep.subr.mxu0 0.0
        %713 = vmatpush2.msra.mxu0 0.0
        %714 = vmatprep.subr.mxu0 0.0
        %715 = vmatpush2.msra.mxu0 0.0
        %716 = vmatprep.subr.mxu0 0.0
        %717 = vmatpush2.msra.mxu0 0.0
        %718 = vmatprep.subr.mxu0 0.0
        %719 = vmatpush2.msra.mxu0 0.0
        %720 = vmatprep.subr.mxu0 0.0
        %721 = vmatpush2.msra.mxu0 0.0
        %722 = vmatprep.subr.mxu0 0.0
        %723 = vmatpush2.msra.mxu0 0.0
        %724 = vmatprep.subr.mxu0 0.0
        %725 = vmatpush2.msra.mxu0 0.0
        %726 = vmatprep.subr.mxu0 0.0
        %727 = vmatpush2.msra.mxu0 0.0
        %728 = vmatprep.subr.mxu0 0.0
        %729 = vmatpush2.msra.mxu0 0.0
        %730 = vmatprep.subr.mxu0 0.0
        %731 = vmatpush2.msra.mxu0 0.0
        %732 = vmatprep.subr.mxu0 0.0
        %733 = vmatpush2.msra.mxu0 0.0
        %734 = vmatprep.subr.mxu0 0.0
        %735 = vmatpush2.msra.mxu0 0.0
        %736 = vmatprep.mubr.f32.mxu0 0.0
        %737 = vmatmul.mubr.f32.gmra.mxu0 %v667
        %v738 = vpop.f32.mrf.mxu0
        %v739 = vadd.f32 %v659, %v738
        %v740 = vpop.f32.mrf.mxu0
        %v741 = vadd.f32 %v659, %v740
        %742 = vmatprep.mubr.f32.mxu0 0.0
        %743 = vmatmul.mubr.f32.gmra.mxu0 %v670
        %v744 = vpop.f32.mrf.mxu0
        %v745 = vadd.f32 %v664, %v744
        %v746 = vpop.f32.mrf.mxu0
        %v747 = vadd.f32 %v664, %v746
        %748 = vdwg.mxu0
        %v749 = vmax.f32 %v739, 0.0
        %v750 = vmax.f32 %v741, 0.0
        %v751 = vmax.f32 %v745, 0.0
        %v752 = vmax.f32 %v747, 0.0
        %v753 = vld [vmem:[%s3] sm:$0xff]
        %v754 = vld [vmem:[%s3 + $0x8] sm:$0xff]
        %v755 = vld [vmem:[%s3 + $0x10] sm:$0xff]
        %v756 = vld [vmem:[%s3 + $0x18] sm:$0xff]
        %v757 = vld [vmem:[%s3 + $0x20] sm:$0xff]
        %v758 = vld [vmem:[%s3 + $0x28] sm:$0xff]
        %v759 = vld [vmem:[%s3 + $0x30] sm:$0xff]
        %v760 = vld [vmem:[%s3 + $0x38] sm:$0xff]
        %v761 = vld [vmem:[%s4] sm:$0xff]
        %v762 = vld [vmem:[%s4 + $0x8] sm:$0xff]
        %v763 = vld [vmem:[%s4 + $0x10] sm:$0xff]
        %v764 = vld [vmem:[%s4 + $0x18] sm:$0xff]
        %v765 = vld [vmem:[%s4 + $0x20] sm:$0xff]
        %v766 = vld [vmem:[%s4 + $0x28] sm:$0xff]
        %v767 = vld [vmem:[%s4 + $0x30] sm:$0xff]
        %v768 = vld [vmem:[%s4 + $0x38] sm:$0xff]
        %770 = vset.pattern.permute.xlu0 0
        %771 = vperm.xlu0 %770, %v761
        %v772 = vpop.permute.xlu0 %771
        %775 = vset.pattern.permute.xlu0 0
        %776 = vperm.xlu0 %775, %v762
        %v777 = vpop.permute.xlu0 %776
        %780 = vset.pattern.permute.xlu0 0
        %781 = vperm.xlu0 %780, %v763
        %v782 = vpop.permute.xlu0 %781
        %785 = vset.pattern.permute.xlu0 0
        %786 = vperm.xlu0 %785, %v764
        %v787 = vpop.permute.xlu0 %786
        %790 = vset.pattern.permute.xlu0 0
        %791 = vperm.xlu0 %790, %v765
        %v792 = vpop.permute.xlu0 %791
        %795 = vset.pattern.permute.xlu0 0
        %796 = vperm.xlu0 %795, %v766
        %v797 = vpop.permute.xlu0 %796
        %800 = vset.pattern.permute.xlu0 0
        %801 = vperm.xlu0 %800, %v767
        %v802 = vpop.permute.xlu0 %801
        %805 = vset.pattern.permute.xlu0 0
        %806 = vperm.xlu0 %805, %v768
        %v807 = vpop.permute.xlu0 %806
        %v810 = vsel %vm514, %v753, 0
        %v813 = vsel %vm514, %v754, 0
        %v816 = vsel %vm514, %v755, 0
        %v819 = vsel %vm514, %v756, 0
        %v822 = vsel %vm514, %v757, 0
        %v825 = vsel %vm514, %v758, 0
        %v828 = vsel %vm514, %v759, 0
        %v831 = vsel %vm514, %v760, 0
        %833 = vmatprep.subr.mxu0 0.0
        %834 = vmatpush1.msra.mxu0 0.0
        %835 = vmatprep.subr.mxu0 0.0
        %836 = vmatpush1.msra.mxu0 0.0
        %837 = vmatprep.subr.mxu0 0.0
        %838 = vmatpush1.msra.mxu0 0.0
        %839 = vmatprep.subr.mxu0 0.0
        %840 = vmatpush1.msra.mxu0 0.0
        %841 = vmatprep.subr.mxu0 0.0
        %842 = vmatpush1.msra.mxu0 0.0
        %843 = vmatprep.subr.mxu0 0.0
        %844 = vmatpush1.msra.mxu0 0.0
        %845 = vmatprep.subr.mxu0 0.0
        %846 = vmatpush1.msra.mxu0 0.0
        %847 = vmatprep.subr.mxu0 0.0
        %848 = vmatpush1.msra.mxu0 0.0
        %849 = vmatprep.subr.mxu0 0.0
        %850 = vmatpush1.msra.mxu0 0.0
        %851 = vmatprep.subr.mxu0 0.0
        %852 = vmatpush1.msra.mxu0 0.0
        %853 = vmatprep.subr.mxu0 0.0
        %854 = vmatpush1.msra.mxu0 0.0
        %855 = vmatprep.subr.mxu0 0.0
        %856 = vmatpush1.msra.mxu0 0.0
        %857 = vmatprep.subr.mxu0 0.0
        %858 = vmatpush1.msra.mxu0 0.0
        %859 = vmatprep.subr.mxu0 0.0
        %860 = vmatpush1.msra.mxu0 0.0
        %861 = vmatprep.subr.mxu0 %v752
        %862 = vmatpush1.msra.mxu0 %v751
        %863 = vmatprep.subr.mxu0 %v750
        %864 = vmatpush1.msra.mxu0 %v749
        %865 = vmatprep.subr.mxu0 0.0
        %866 = vmatpush2.msra.mxu0 0.0
        %867 = vmatprep.subr.mxu0 0.0
        %868 = vmatpush2.msra.mxu0 0.0
        %869 = vmatprep.subr.mxu0 0.0
        %870 = vmatpush2.msra.mxu0 0.0
        %871 = vmatprep.subr.mxu0 0.0
        %872 = vmatpush2.msra.mxu0 0.0
        %873 = vmatprep.subr.mxu0 0.0
        %874 = vmatpush2.msra.mxu0 0.0
        %875 = vmatprep.subr.mxu0 0.0
        %876 = vmatpush2.msra.mxu0 0.0
        %877 = vmatprep.subr.mxu0 0.0
        %878 = vmatpush2.msra.mxu0 0.0
        %879 = vmatprep.subr.mxu0 0.0
        %880 = vmatpush2.msra.mxu0 0.0
        %881 = vmatprep.subr.mxu0 0.0
        %882 = vmatpush2.msra.mxu0 0.0
        %883 = vmatprep.subr.mxu0 0.0
        %884 = vmatpush2.msra.mxu0 0.0
        %885 = vmatprep.subr.mxu0 0.0
        %886 = vmatpush2.msra.mxu0 0.0
        %887 = vmatprep.subr.mxu0 0.0
        %888 = vmatpush2.msra.mxu0 0.0
        %889 = vmatprep.subr.mxu0 0.0
        %890 = vmatpush2.msra.mxu0 0.0
        %891 = vmatprep.subr.mxu0 0.0
        %892 = vmatpush2.msra.mxu0 0.0
        %893 = vmatprep.subr.mxu0 0.0
        %894 = vmatpush2.msra.mxu0 0.0
        %895 = vmatprep.subr.mxu0 0.0
        %896 = vmatpush2.msra.mxu0 0.0
        %897 = vmatprep.mubr.f32.mxu0 0.0
        %898 = vmatmul.mubr.f32.gmra.mxu0 %v810
        %v899 = vpop.f32.mrf.mxu0
        %v900 = vadd.f32 %v772, %v899
        %v901 = vpop.f32.mrf.mxu0
        %v902 = vadd.f32 %v772, %v901
        %903 = vmatprep.mubr.f32.mxu0 0.0
        %904 = vmatmul.mubr.f32.gmra.mxu0 %v813
        %v905 = vpop.f32.mrf.mxu0
        %v906 = vadd.f32 %v777, %v905
        %v907 = vpop.f32.mrf.mxu0
        %v908 = vadd.f32 %v777, %v907
        %909 = vmatprep.mubr.f32.mxu0 0.0
        %910 = vmatmul.mubr.f32.gmra.mxu0 %v816
        %v911 = vpop.f32.mrf.mxu0
        %v912 = vadd.f32 %v782, %v911
        %v913 = vpop.f32.mrf.mxu0
        %v914 = vadd.f32 %v782, %v913
        %915 = vmatprep.mubr.f32.mxu0 0.0
        %916 = vmatmul.mubr.f32.gmra.mxu0 %v819
        %v917 = vpop.f32.mrf.mxu0
        %v918 = vadd.f32 %v787, %v917
        %v919 = vpop.f32.mrf.mxu0
        %v920 = vadd.f32 %v787, %v919
        %921 = vmatprep.mubr.f32.mxu0 0.0
        %922 = vmatmul.mubr.f32.gmra.mxu0 %v822
        %v923 = vpop.f32.mrf.mxu0
        %v924 = vadd.f32 %v792, %v923
        %v925 = vpop.f32.mrf.mxu0
        %v926 = vadd.f32 %v792, %v925
        %927 = vmatprep.mubr.f32.mxu0 0.0
        %928 = vmatmul.mubr.f32.gmra.mxu0 %v825
        %v929 = vpop.f32.mrf.mxu0
        %v930 = vadd.f32 %v797, %v929
        %v931 = vpop.f32.mrf.mxu0
        %v932 = vadd.f32 %v797, %v931
        %933 = vmatprep.mubr.f32.mxu0 0.0
        %934 = vmatmul.mubr.f32.gmra.mxu0 %v828
        %v935 = vpop.f32.mrf.mxu0
        %v936 = vadd.f32 %v802, %v935
        %v937 = vpop.f32.mrf.mxu0
        %v938 = vadd.f32 %v802, %v937
        %939 = vmatprep.mubr.f32.mxu0 0.0
        %940 = vmatmul.mubr.f32.gmra.mxu0 %v831
        %v941 = vpop.f32.mrf.mxu0
        %v942 = vadd.f32 %v807, %v941
        %v943 = vpop.f32.mrf.mxu0
        %v944 = vadd.f32 %v807, %v943
        %945 = vdwg.mxu0
        %v946 = vadd.f32 %v900, %v606
        %v947 = vadd.f32 %v902, %v608
        %v948 = vadd.f32 %v906, %v612
        %v949 = vadd.f32 %v908, %v614
        %v950 = vadd.f32 %v912, %v618
        %v951 = vadd.f32 %v914, %v620
        %v952 = vadd.f32 %v918, %v624
        %v953 = vadd.f32 %v920, %v626
        %v954 = vadd.f32 %v924, %v630
        %v955 = vadd.f32 %v926, %v632
        %v956 = vadd.f32 %v930, %v636
        %v957 = vadd.f32 %v932, %v638
        %v958 = vadd.f32 %v936, %v642
        %v959 = vadd.f32 %v938, %v644
        %v960 = vadd.f32 %v942, %v648
        %v961 = vadd.f32 %v944, %v650
        %v962 = vxor.u32 %v946, 2147483648
        %v963 = vxor.u32 %v947, 2147483648
        %v964 = vxor.u32 %v948, 2147483648
        %v965 = vxor.u32 %v949, 2147483648
        %v966 = vxor.u32 %v950, 2147483648
        %v967 = vxor.u32 %v951, 2147483648
        %v968 = vxor.u32 %v952, 2147483648
        %v969 = vxor.u32 %v953, 2147483648
        %v970 = vxor.u32 %v954, 2147483648
        %v971 = vxor.u32 %v955, 2147483648
        %v972 = vxor.u32 %v956, 2147483648
        %v973 = vxor.u32 %v957, 2147483648
        %v974 = vxor.u32 %v958, 2147483648
        %v975 = vxor.u32 %v959, 2147483648
        %v976 = vxor.u32 %v960, 2147483648
        %v977 = vxor.u32 %v961, 2147483648
        %v978 = vmul.f32 %v962, 1.442695
        %v979 = vpow.pop %v978
        %v980 = vmul.f32 %v963, 1.442695
        %v981 = vpow.pop %v980
        %v982 = vmul.f32 %v964, 1.442695
        %v983 = vpow.pop %v982
        %v984 = vmul.f32 %v965, 1.442695
        %v985 = vpow.pop %v984
        %v986 = vmul.f32 %v966, 1.442695
        %v987 = vpow.pop %v986
        %v988 = vmul.f32 %v967, 1.442695
        %v989 = vpow.pop %v988
        %v990 = vmul.f32 %v968, 1.442695
        %v991 = vpow.pop %v990
        %v992 = vmul.f32 %v969, 1.442695
        %v993 = vpow.pop %v992
        %v994 = vmul.f32 %v970, 1.442695
        %v995 = vpow.pop %v994
        %v996 = vmul.f32 %v971, 1.442695
        %v997 = vpow.pop %v996
        %v998 = vmul.f32 %v972, 1.442695
        %v999 = vpow.pop %v998
        %v1000 = vmul.f32 %v973, 1.442695
        %v1001 = vpow.pop %v1000
        %v1002 = vmul.f32 %v974, 1.442695
        %v1003 = vpow.pop %v1002
        %v1004 = vmul.f32 %v975, 1.442695
        %v1005 = vpow.pop %v1004
        %v1006 = vmul.f32 %v976, 1.442695
        %v1007 = vpow.pop %v1006
        %v1008 = vmul.f32 %v977, 1.442695
        %v1009 = vpow.pop %v1008
        %v1010 = vadd.f32 %v979, 1.0
        %v1011 = vadd.f32 %v981, 1.0
        %v1012 = vadd.f32 %v983, 1.0
        %v1013 = vadd.f32 %v985, 1.0
        %v1014 = vadd.f32 %v987, 1.0
        %v1015 = vadd.f32 %v989, 1.0
        %v1016 = vadd.f32 %v991, 1.0
        %v1017 = vadd.f32 %v993, 1.0
        %v1018 = vadd.f32 %v995, 1.0
        %v1019 = vadd.f32 %v997, 1.0
        %v1020 = vadd.f32 %v999, 1.0
        %v1021 = vadd.f32 %v1001, 1.0
        %v1022 = vadd.f32 %v1003, 1.0
        %v1023 = vadd.f32 %v1005, 1.0
        %v1024 = vadd.f32 %v1007, 1.0
        %v1025 = vadd.f32 %v1009, 1.0
        %v1026 = vrcp.pop %v1010
        %v1027 = vmul.f32 1.0, %v1026
        %v1028 = vrcp.pop %v1011
        %v1029 = vmul.f32 1.0, %v1028
        %v1030 = vrcp.pop %v1012
        %v1031 = vmul.f32 1.0, %v1030
        %v1032 = vrcp.pop %v1013
        %v1033 = vmul.f32 1.0, %v1032
        %v1034 = vrcp.pop %v1014
        %v1035 = vmul.f32 1.0, %v1034
        %v1036 = vrcp.pop %v1015
        %v1037 = vmul.f32 1.0, %v1036
        %v1038 = vrcp.pop %v1016
        %v1039 = vmul.f32 1.0, %v1038
        %v1040 = vrcp.pop %v1017
        %v1041 = vmul.f32 1.0, %v1040
        %v1042 = vrcp.pop %v1018
        %v1043 = vmul.f32 1.0, %v1042
        %v1044 = vrcp.pop %v1019
        %v1045 = vmul.f32 1.0, %v1044
        %v1046 = vrcp.pop %v1020
        %v1047 = vmul.f32 1.0, %v1046
        %v1048 = vrcp.pop %v1021
        %v1049 = vmul.f32 1.0, %v1048
        %v1050 = vrcp.pop %v1022
        %v1051 = vmul.f32 1.0, %v1050
        %v1052 = vrcp.pop %v1023
        %v1053 = vmul.f32 1.0, %v1052
        %v1054 = vrcp.pop %v1024
        %v1055 = vmul.f32 1.0, %v1054
        %v1056 = vrcp.pop %v1025
        %v1057 = vmul.f32 1.0, %v1056
        %v1058 = vmul.f32 %v331, %v1027
        %v1059 = vmul.f32 %v332, %v1029
        %v1060 = vmul.f32 %v333, %v1031
        %v1061 = vmul.f32 %v334, %v1033
        %v1062 = vmul.f32 %v335, %v1035
        %v1063 = vmul.f32 %v336, %v1037
        %v1064 = vmul.f32 %v337, %v1039
        %v1065 = vmul.f32 %v338, %v1041
        %v1066 = vmul.f32 %v339, %v1043
        %v1067 = vmul.f32 %v340, %v1045
        %v1068 = vmul.f32 %v341, %v1047
        %v1069 = vmul.f32 %v342, %v1049
        %v1070 = vmul.f32 %v343, %v1051
        %v1071 = vmul.f32 %v344, %v1053
        %v1072 = vmul.f32 %v345, %v1055
        %v1073 = vmul.f32 %v346, %v1057
        %1074 = vst [vmem:[%s325] sm:$0xff] %v1058
        %1075 = vst [vmem:[%s325 + $0x8] sm:$0xff] %v1059
        %1076 = vst [vmem:[%s325 + $0x10] sm:$0xff] %v1060
        %1077 = vst [vmem:[%s325 + $0x18] sm:$0xff] %v1061
        %1078 = vst [vmem:[%s325 + $0x20] sm:$0xff] %v1062
        %1079 = vst [vmem:[%s325 + $0x28] sm:$0xff] %v1063
        %1080 = vst [vmem:[%s325 + $0x30] sm:$0xff] %v1064
        %1081 = vst [vmem:[%s325 + $0x38] sm:$0xff] %v1065
        %1082 = vst [vmem:[%s325 + $0x40] sm:$0xff] %v1066
        %1083 = vst [vmem:[%s325 + $0x48] sm:$0xff] %v1067
        %1084 = vst [vmem:[%s325 + $0x50] sm:$0xff] %v1068
        %1085 = vst [vmem:[%s325 + $0x58] sm:$0xff] %v1069
        %1086 = vst [vmem:[%s325 + $0x60] sm:$0xff] %v1070
        %1087 = vst [vmem:[%s325 + $0x68] sm:$0xff] %v1071
        %1088 = vst [vmem:[%s325 + $0x70] sm:$0xff] %v1072
        %1089 = vst [vmem:[%s325 + $0x78] sm:$0xff] %v1073
        %s1090 = sand.u32 %s225, 1
        %s1091 = scalar_lea.sflag [#allocation3], %s1090
        %s1092 = sand.u32 %s225, 1
        %s1093 = smul.addr %s1092, 128
        %s1094 = scalar_lea.vmem [#allocation2], %s1093
        // Predicated region
        $region57: #{tpu_custom_call.1} parent=55 // pred_check
          %p1095 = pneg %p235
        $region58: #{tpu_custom_call.1} parent=55 // pred_check_branch
          %1097 = sbr.rel (%p1095) target = $region60
        $region59: #{tpu_custom_call.1} parent=55 // pred_region
          %s1099 = ssub.s32 2048, 2048
          %1100 = vsyncadd %s1091, %s1099
          %s1101 = smul.addr %s23, 16
          %s1102 = smul.addr %s1101, 128
          %s1103 = scalar_lea.hbm %s9, %s1102
          %s1104 = sshll.u32 %s1094, 4
          %s1105 = int_to_ptr.vmem [resolvable:$true] %s1104
          %1110 = dma.vmem_to_hbm [thread:$0]  %s1105, 2048, %s1103, %s1091, 256, 256, 16
        $region60: #{tpu_custom_call.1} parent=55 // pred_fallthru
          _
      $region56: #{tpu_custom_call.1} parent=5 // pred_fallthru
        _
      %p1111 = scmp.le.s32.totalorder 2, %s18
      // Predicated region
      $region61: #{tpu_custom_call.1} parent=5 // pred_check
        %p1112 = pneg %p1111
      $region62: #{tpu_custom_call.1} parent=5 // pred_check_branch
        %1114 = sbr.rel (%p1112) target = $region64
      $region63: #{tpu_custom_call.1} parent=5 // pred_region
        %s1115 = ssub.s32 %s18, 2
        // Predicated region
        $region65: #{tpu_custom_call.1} parent=63 // pred_check
          %p1116 = pneg %p241
        $region66: #{tpu_custom_call.1} parent=63 // pred_check_branch
          %1118 = sbr.rel (%p1116) target = $region68
        $region67: #{tpu_custom_call.1} parent=63 // pred_region
          %s1119 = sand.u32 %s226, 1
          %s1120 = scalar_lea.sflag [#allocation3], %s1119
          %s1121 = sand.u32 %s226, 1
          %s1122 = smul.addr %s1121, 128
          %s1123 = scalar_lea.vmem [#allocation2], %s1122
          %1124 = dma.done %s1120, 2048
        $region68: #{tpu_custom_call.1} parent=63 // pred_fallthru
          _
      $region64: #{tpu_custom_call.1} parent=5 // pred_fallthru
        _
    $region6: #{tpu_custom_call.1} parent=1 // loop_footer
      %s22 = sadd.s32 1, %s18
    $region7: #{tpu_custom_call.1} parent=1 // loop_footer_branch
      %17 = sbr.rel target = $region3
    $region8: #{tpu_custom_call.1} parent=1 // loop_exit
      _
    %1125 = vsyncpa [#allocation3], 1
    %s1126 = scalar_lea.sflag [#allocation3], 1
    %1127 = vsyncpa %s1126, 1

</llo_original>
